<compile_context>
chip_gen: v7x
topology: tpu7x:2x2x1
jax: 0.10.0
libtpu: 0.0.40
codegen_flags: <defaults>
</compile_context>

<pallas_src>
import functools
import math
from typing import NamedTuple

import jax
import jax.numpy as jnp
from jax.experimental import pallas as pl
from jax.experimental.pallas import tpu as pltpu

_INV_SQRT2 = 0.7071067811865476


def _gelu_erf(h):
    # exact (erf) GELU in f32 — matches torch.nn.GELU(approximate='none')
    return 0.5 * h * (1.0 + jax.lax.erf(h * _INV_SQRT2))


# --------------------------------------------------------------------------
# Kernels
# --------------------------------------------------------------------------
def _mlp_kernel_single(x_ref, w1_ref, b1_ref, w2_ref, b2_ref, o_ref):
    """Whole intermediate dim in one tile: no accumulator scratch needed."""
    h = jnp.dot(x_ref[...], w1_ref[...], preferred_element_type=jnp.float32)
    h = _gelu_erf(h + b1_ref[...])                       # bias is f32
    out = jnp.dot(h.astype(w2_ref.dtype), w2_ref[...],
                  preferred_element_type=jnp.float32) + b2_ref[...]
    o_ref[...] = out.astype(o_ref.dtype)


def _mlp_kernel_multi(x_ref, w1_ref, b1_ref, w2_ref, b2_ref, o_ref, acc_ref):
    """Intermediate dim tiled along grid axis 1 (reduction, 'arbitrary')."""
    j = pl.program_id(1)

    @pl.when(j == 0)
    def _init():
        acc_ref[...] = jnp.zeros_like(acc_ref)

    # c_fc partial: [tm, Hp] @ [Hp, td] -> f32
    h = jnp.dot(x_ref[...], w1_ref[...], preferred_element_type=jnp.float32)
    h = _gelu_erf(h + b1_ref[...])                       # bias is f32
    # c_proj partial: [tm, td] @ [td, Hp], accumulated in f32 scratch
    acc_ref[...] += jnp.dot(h.astype(w2_ref.dtype), w2_ref[...],
                            preferred_element_type=jnp.float32)

    @pl.when(j == pl.num_programs(1) - 1)
    def _finalize():
        o_ref[...] = (acc_ref[...] + b2_ref[...]).astype(o_ref.dtype)


# --------------------------------------------------------------------------
# Host-side helpers
# --------------------------------------------------------------------------
def _round_up(x, m):
    return (x + m - 1) // m * m


def _vmem_capacity_bytes():
    """Best-effort VMEM capacity lookup (v7x = 64 MiB/TC, v5e/v6e = 128 MiB)."""
    try:
        kind = jax.devices()[0].device_kind.lower()
    except Exception:
        kind = ""
    if "v7" in kind:
        return 64 << 20
    return 128 << 20


class MLPMeta(NamedTuple):
    H: int      # logical hidden size
    D: int      # logical intermediate size
    Hp: int     # padded hidden (multiple of 128)
    Dp: int     # padded intermediate (multiple of td)
    td: int     # intermediate tile (multiple of 128, divides Dp)


def prepare_mlp_params(w_fc, b_fc, w_proj, b_proj, *, td=512,
                       compute_dtype=jnp.bfloat16):
    """One-time weight preparation: pad to lane-dense tiles and cast the
    weight matrices to the compute dtype. Biases stay f32.

    w_fc: [H, D]; b_fc: [D]; w_proj: [D, H]; b_proj: [H]   (x @ W convention,
    i.e. the transpose of PyTorch's nn.Linear weight layout).
    """
    H, D = w_fc.shape
    cdt = jnp.dtype(compute_dtype)

    Hp = _round_up(H, 128)
    td_eff = min(_round_up(td, 128), _round_up(D, 128))
    Dp = _round_up(D, td_eff)           # td always divides Dp (no gcd collapse)

    # Zero padding is mathematically inert: padded x cols hit zero w_fc rows,
    # padded D entries get zero bias -> GELU(0)=0 -> contribute nothing to
    # c_proj; padded H output columns are sliced off in the forward pass.
    w1 = jnp.pad(w_fc.astype(cdt), ((0, Hp - H), (0, Dp - D)))
    b1 = jnp.pad(b_fc.astype(jnp.float32), (0, Dp - D)).reshape(1, Dp)
    w2 = jnp.pad(w_proj.astype(cdt), ((0, Dp - D), (0, Hp - H)))
    b2 = jnp.pad(b_proj.astype(jnp.float32), (0, Hp - H)).reshape(1, Hp)

    params = {"w1": w1, "b1": b1, "w2": w2, "b2": b2}
    return params, MLPMeta(H, D, Hp, Dp, td_eff)


@functools.partial(jax.jit, static_argnames=("meta", "tm"))
def mlp_pallas(x, params, meta, tm=None):
    """x: [B, T, H] -> [B, T, H] using pre-prepared (padded, cast) params."""
    w1, b1, w2, b2 = params["w1"], params["b1"], params["w2"], params["b2"]
    H, D, Hp, Dp, td = meta
    cdt = w1.dtype
    out_dtype = x.dtype

    B, T, Hx = x.shape
    if Hx != H:
        raise ValueError(f"x hidden dim {Hx} != prepared hidden dim {H}")
    M = B * T

    # dtype-aware sublane tile (bf16 packs 16 sublanes per vreg).
    sub = 16 if cdt.itemsize == 2 else (32 if cdt.itemsize == 1 else 8)

    vmem_cap = _vmem_capacity_bytes()
    budget = (52 << 20) if vmem_cap <= (64 << 20) else (100 << 20)

    if tm is None:
        if cdt.itemsize >= 4:
            tm = 256
        else:
            tm = 512 if vmem_cap <= (64 << 20) else 1024

    tm_eff = min(tm, _round_up(M, sub))
    # Guarantee >=2 i-blocks when M allows it (megacore / v7x dual-TC).
    if _round_up(M, tm_eff) // tm_eff < 2 and M >= 2 * sub:
        tm_eff = min(tm_eff, _round_up(-(-M // 2), sub))

    def _vmem_est(tmv):
        bc = cdt.itemsize
        bo = jnp.dtype(out_dtype).itemsize
        return (2 * tmv * Hp * bc                 # x tiles (double buffered)
                + 2 * tmv * Hp * bo               # out tiles (double buffered)
                + 2 * (Hp * td + td * Hp) * bc    # W1/W2 tiles (double buffered)
                + 2 * (td + Hp) * 4               # f32 bias rows
                + tmv * Hp * 4                    # f32 accumulator scratch
                + 2 * tmv * td * 4)               # f32 [tm,td] intermediate + slack

    while _vmem_est(tm_eff) > budget and tm_eff > sub:
        tm_eff = max(sub, _round_up(tm_eff // 2, sub))

    Mp = _round_up(M, tm_eff)
    n_i = Mp // tm_eff
    n_j = Dp // td

    # Activations: skip pad/cast entirely when already aligned (common case).
    x2 = x.reshape(M, H)
    if x2.dtype != cdt:
        x2 = x2.astype(cdt)
    if Mp != M or Hp != H:
        x2 = jnp.pad(x2, ((0, Mp - M), (0, Hp - H)))

    est = _vmem_est(tm_eff)
    cparams = {"dimension_semantics": ("parallel", "arbitrary") if n_j > 1
               else ("parallel",)}
    if est > 28 * 1024 * 1024:
        cparams["vmem_limit_bytes"] = int(min(est * 13 // 10 + (2 << 20),
                                              budget))

    if n_j == 1:
        out = pl.pallas_call(
            _mlp_kernel_single,
            out_shape=jax.ShapeDtypeStruct((Mp, Hp), out_dtype),
            grid_spec=pltpu.PrefetchScalarGridSpec(
                num_scalar_prefetch=0,
                grid=(n_i,),
                in_specs=[
                    pl.BlockSpec((tm_eff, Hp), lambda i: (i, 0)),   # x tile
                    pl.BlockSpec((Hp, td), lambda i: (0, 0)),       # c_fc W
                    pl.BlockSpec((1, td), lambda i: (0, 0)),        # c_fc b (f32)
                    pl.BlockSpec((td, Hp), lambda i: (0, 0)),       # c_proj W
                    pl.BlockSpec((1, Hp), lambda i: (0, 0)),        # c_proj b (f32)
                ],
                out_specs=pl.BlockSpec((tm_eff, Hp), lambda i: (i, 0)),
            ),
            compiler_params=pltpu.CompilerParams(**cparams),
        )(x2, w1, b1, w2, b2)
    else:
        out = pl.pallas_call(
            _mlp_kernel_multi,
            out_shape=jax.ShapeDtypeStruct((Mp, Hp), out_dtype),
            grid_spec=pltpu.PrefetchScalarGridSpec(
                num_scalar_prefetch=0,
                grid=(n_i, n_j),
                in_specs=[
                    pl.BlockSpec((tm_eff, Hp), lambda i, j: (i, 0)),   # x tile
                    pl.BlockSpec((Hp, td), lambda i, j: (0, j)),       # c_fc W
                    pl.BlockSpec((1, td), lambda i, j: (0, j)),        # c_fc b (f32)
                    pl.BlockSpec((td, Hp), lambda i, j: (j, 0)),       # c_proj W
                    pl.BlockSpec((1, Hp), lambda i, j: (0, 0)),        # c_proj b (f32)
                ],
                out_specs=pl.BlockSpec((tm_eff, Hp), lambda i, j: (i, 0)),
                scratch_shapes=[pltpu.VMEM((tm_eff, Hp), jnp.float32)],
            ),
            compiler_params=pltpu.CompilerParams(**cparams),
        )(x2, w1, b1, w2, b2)

    if Mp != M or Hp != H:
        out = out[:M, :H]
    return out.reshape(B, T, H)


def mlp_reference(x, w_fc, b_fc, w_proj, b_proj):
    h = x.astype(jnp.float32) @ w_fc.astype(jnp.float32) + b_fc.astype(jnp.float32)
    h = _gelu_erf(h)
    return (h @ w_proj.astype(jnp.float32) + b_proj.astype(jnp.float32)).astype(x.dtype)


if __name__ == "__main__":
    # config: hidden_size=32, hidden_ratio=4 -> intermediate=128, bias=True
    batch, seq, hidden_size = 2, 8, 32
    hidden_ratio = 4
    inter = int(hidden_ratio * hidden_size)

    key = jax.random.PRNGKey(0)
    kx, k1, k2, k3, k4 = jax.random.split(key, 5)

    x = jax.random.normal(kx, (batch, seq, hidden_size), dtype=jnp.float32)
    # PyTorch Linear weight is [out, in]; stored transposed as [in, out] so the
    # kernel computes x @ W.
    w_fc = jax.random.normal(k1, (hidden_size, inter), dtype=jnp.float32) * 0.05
    b_fc = jax.random.normal(k2, (inter,), dtype=jnp.float32) * 0.01
    w_proj = jax.random.normal(k3, (inter, hidden_size), dtype=jnp.float32) * 0.05
    b_proj = jax.random.normal(k4, (hidden_size,), dtype=jnp.float32) * 0.01

    y_ref = mlp_reference(x, w_fc, b_fc, w_proj, b_proj)

    # 1) Default bf16 compute path (f32 accumulation / GELU / biases).
    params_bf16, meta_bf16 = prepare_mlp_params(w_fc, b_fc, w_proj, b_proj)
    y_bf16 = jax.block_until_ready(mlp_pallas(x, params_bf16, meta_bf16))
    assert y_bf16.shape == (batch, seq, hidden_size)
    assert jnp.allclose(y_bf16, y_ref, atol=5e-2, rtol=5e-2), "bf16 mismatch vs reference"

    # 2) f32 compute path — exact match vs reference.
    params_f32, meta_f32 = prepare_mlp_params(w_fc, b_fc, w_proj, b_proj,
                                              compute_dtype=jnp.float32)
    y_f32 = jax.block_until_ready(mlp_pallas(x, params_f32, meta_f32))
    assert jnp.allclose(y_f32, y_ref, atol=1e-5, rtol=1e-5), "f32 mismatch vs reference"

    # 3) ragged token count (M not a multiple of the sublane tile) — padding path.
    xr = jax.random.normal(kx, (3, 5, hidden_size), dtype=jnp.float32)
    yr = jax.block_until_ready(mlp_pallas(xr, params_f32, meta_f32))
    yr_ref = mlp_reference(xr, w_fc, b_fc, w_proj, b_proj)
    assert yr.shape == (3, 5, hidden_size)
    assert jnp.allclose(yr, yr_ref, atol=1e-5, rtol=1e-5), "ragged mismatch vs reference"

    print("KERNEL_OK")
</pallas_src>

<mosaic_0001>
module attributes {stable_mosaic.version = 11 : i64} {
  func.func @_mlp_kernel_single(%arg0: i32, %arg1: memref<16x128xbf16, #tpu.memory_space<vmem>>, %arg2: memref<128x128xbf16, #tpu.memory_space<vmem>>, %arg3: memref<1x128xf32, #tpu.memory_space<vmem>>, %arg4: memref<128x128xbf16, #tpu.memory_space<vmem>>, %arg5: memref<1x128xf32, #tpu.memory_space<vmem>>, %arg6: memref<16x128xf32, #tpu.memory_space<vmem>>) attributes {dimension_semantics = [#tpu.dimension_semantics<parallel>], iteration_bounds = array<i64: 1>, scalar_prefetch = 0 : i64, scratch_operands = 0 : i64, tpu.core_type = #tpu.core_type<tc>, window_params = [{transform_indices = @transform_0, window_bounds = array<i64: 16, 128>}, {pipeline_mode = #tpu.pipeline_mode<synchronous>, transform_indices = @transform_1, window_bounds = array<i64: 128, 128>}, {pipeline_mode = #tpu.pipeline_mode<synchronous>, transform_indices = @transform_2, window_bounds = array<i64: 1, 128>}, {pipeline_mode = #tpu.pipeline_mode<synchronous>, transform_indices = @transform_3, window_bounds = array<i64: 128, 128>}, {pipeline_mode = #tpu.pipeline_mode<synchronous>, transform_indices = @transform_4, window_bounds = array<i64: 1, 128>}, {transform_indices = @transform_5, window_bounds = array<i64: 16, 128>}]} {
    %c0 = arith.constant 0 : index
    %c0_0 = arith.constant 0 : index
    %0 = vector.load %arg1[%c0, %c0_0] : memref<16x128xbf16, #tpu.memory_space<vmem>>, vector<16x128xbf16>
    %c0_1 = arith.constant 0 : index
    %c0_2 = arith.constant 0 : index
    %1 = vector.load %arg2[%c0_1, %c0_2] : memref<128x128xbf16, #tpu.memory_space<vmem>>, vector<128x128xbf16>
    %cst = arith.constant dense<0.000000e+00> : vector<16x128xf32>
    %2 = tpu.matmul %0, %1, %cst {dimension_numbers = #tpu.dot_dimension_numbers<[1], [0], [0], [1], [0, 0, 1, 1], [], []>} : vector<16x128xbf16>, vector<128x128xbf16>, vector<16x128xf32> -> vector<16x128xf32>
    %c0_3 = arith.constant 0 : index
    %c0_4 = arith.constant 0 : index
    %3 = vector.load %arg3[%c0_3, %c0_4] : memref<1x128xf32, #tpu.memory_space<vmem>>, vector<1x128xf32>
    %4 = vector.broadcast %3 : vector<1x128xf32> to vector<16x128xf32>
    %5 = arith.addf %2, %4 : vector<16x128xf32>
    %cst_5 = arith.constant 5.000000e-01 : f32
    %6 = vector.broadcast %cst_5 : f32 to vector<16x128xf32>
    %7 = arith.mulf %6, %5 : vector<16x128xf32>
    %cst_6 = arith.constant 0.707106769 : f32
    %8 = vector.broadcast %cst_6 : f32 to vector<16x128xf32>
    %9 = arith.mulf %5, %8 : vector<16x128xf32>
    %10 = math.erf %9 : vector<16x128xf32>
    %cst_7 = arith.constant 1.000000e+00 : f32
    %11 = vector.broadcast %cst_7 : f32 to vector<16x128xf32>
    %12 = arith.addf %11, %10 : vector<16x128xf32>
    %13 = arith.mulf %7, %12 : vector<16x128xf32>
    %14 = arith.truncf %13 : vector<16x128xf32> to vector<16x128xbf16>
    %c0_8 = arith.constant 0 : index
    %c0_9 = arith.constant 0 : index
    %15 = vector.load %arg4[%c0_8, %c0_9] : memref<128x128xbf16, #tpu.memory_space<vmem>>, vector<128x128xbf16>
    %cst_10 = arith.constant dense<0.000000e+00> : vector<16x128xf32>
    %16 = tpu.matmul %14, %15, %cst_10 {dimension_numbers = #tpu.dot_dimension_numbers<[1], [0], [0], [1], [0, 0, 1, 1], [], []>} : vector<16x128xbf16>, vector<128x128xbf16>, vector<16x128xf32> -> vector<16x128xf32>
    %c0_11 = arith.constant 0 : index
    %c0_12 = arith.constant 0 : index
    %17 = vector.load %arg5[%c0_11, %c0_12] : memref<1x128xf32, #tpu.memory_space<vmem>>, vector<1x128xf32>
    %18 = vector.broadcast %17 : vector<1x128xf32> to vector<16x128xf32>
    %19 = arith.addf %16, %18 : vector<16x128xf32>
    %c0_13 = arith.constant 0 : index
    %c0_14 = arith.constant 0 : index
    %20 = vector.load %arg6[%c0_13, %c0_14] : memref<16x128xf32, #tpu.memory_space<vmem>>, vector<16x128xf32>
    tpu.vector_store %arg6[%c0_13, %c0_14], %19 {strides = array<i32>} : memref<16x128xf32, #tpu.memory_space<vmem>>, vector<16x128xf32>,
    return
  }
  func.func @transform_0(%arg0: i32) -> (i32, i32) {
    %c0_i32 = arith.constant 0 : i32
    %c0_i32_0 = arith.constant 0 : i32
    return %arg0, %c0_i32 : i32, i32
  }
  func.func @transform_1(%arg0: i32) -> (i32, i32) {
    %c0_i32 = arith.constant 0 : i32
    %c0_i32_0 = arith.constant 0 : i32
    %c0_i32_1 = arith.constant 0 : i32
    return %c0_i32, %c0_i32_0 : i32, i32
  }
  func.func @transform_2(%arg0: i32) -> (i32, i32) {
    %c0_i32 = arith.constant 0 : i32
    %c0_i32_0 = arith.constant 0 : i32
    %c0_i32_1 = arith.constant 0 : i32
    return %c0_i32, %c0_i32_0 : i32, i32
  }
  func.func @transform_3(%arg0: i32) -> (i32, i32) {
    %c0_i32 = arith.constant 0 : i32
    %c0_i32_0 = arith.constant 0 : i32
    %c0_i32_1 = arith.constant 0 : i32
    return %c0_i32, %c0_i32_0 : i32, i32
  }
  func.func @transform_4(%arg0: i32) -> (i32, i32) {
    %c0_i32 = arith.constant 0 : i32
    %c0_i32_0 = arith.constant 0 : i32
    %c0_i32_1 = arith.constant 0 : i32
    return %c0_i32, %c0_i32_0 : i32, i32
  }
  func.func @transform_5(%arg0: i32) -> (i32, i32) {
    %c0_i32 = arith.constant 0 : i32
    %c0_i32_0 = arith.constant 0 : i32
    return %arg0, %c0_i32 : i32, i32
  }
}

</mosaic_0001>

<llo_original>
// kernel: mlp_pallas.1
$region0: #{mlp_pallas.1}
  #allocation0 [shape = 'u32[]', space=smem, size = 0x4, offset = 0x4, fixed_abs, tag = 'smem constant byte address 0x4 - core index']
  #allocation1 [shape = 'u32[144,128]{1,0:T(1,128)}', space=vmem, size = 0x12000, scoped, tag = 'internal scratch']
  %s0 = inlined_call_operand.vmem [shape: bf16[16,128], index: 0, kind: input, shape index: {}]
  %s1 = inlined_call_operand.hbm [shape: bf16[128,128], index: 1, kind: input, shape index: {}]
  %s2 = inlined_call_operand.vmem [shape: f32[1,128], index: 2, kind: input, shape index: {}]
  %s3 = inlined_call_operand.hbm [shape: bf16[128,128], index: 3, kind: input, shape index: {}]
  %s4 = inlined_call_operand.vmem [shape: f32[1,128], index: 4, kind: input, shape index: {}]
  %s5 = inlined_call_operand.vmem [shape: f32[16,128], index: 5, kind: output, shape index: {}]
  %s6 = sld [smem:[#allocation0]]
  $region38: #{mlp_pallas.1} parent=0
    _
  %s8 = ssub.s32 1, %s6
  %s9 = scalar_select 0, %s8, %s6
  $region1: #{mlp_pallas.1} parent=0
    #allocation2 [shape = 'u8[32768]{0}', space=vmem, size = 0x8000, scoped, tag = 'input window, operand 1, single buffered']
    #allocation3 [shape = 's32[1]{0}', space=sflag, size = 0x4, scoped, tag = 'scoped memory for mlp_pallas.1']
    #allocation4 [shape = 'u8[32768]{0}', space=vmem, size = 0x8000, scoped, tag = 'input window, operand 3, single buffered']
    #allocation5 [shape = 's32[1]{0}', space=sflag, size = 0x4, scoped, tag = 'scoped memory for mlp_pallas.1']
    %10 = vsyncpa [#allocation3], 0
    %11 = vsyncpa [#allocation5], 0
    // Predicated region
    $region2: #{mlp_pallas.1} parent=1 // pred_check
      _
    $region3: #{mlp_pallas.1} parent=1 // pred_check_branch
      %13 = sbr.rel (0) target = $region5
    $region4: #{mlp_pallas.1} parent=1 // pred_region
      _
    $region5: #{mlp_pallas.1} parent=1 // pred_fallthru
      _
    // Predicated region
    $region6: #{mlp_pallas.1} parent=1 // pred_check
      _
    $region7: #{mlp_pallas.1} parent=1 // pred_check_branch
      %15 = sbr.rel (0) target = $region9
    $region8: #{mlp_pallas.1} parent=1 // pred_region
      %s17 = ssub.s32 1024, 1024
      %18 = vsyncadd [#allocation3], %s17
      %s19 = sshll.u32 [#allocation2], 4
      %s20 = int_to_ptr.vmem [resolvable:$true] %s19
      %25 = dma.hbm_to_vmem [thread:$0]  %s1, 1024, %s20, [#allocation3], 64, 64, 4
    $region9: #{mlp_pallas.1} parent=1 // pred_fallthru
      _
    // Predicated region
    $region10: #{mlp_pallas.1} parent=1 // pred_check
      _
    $region11: #{mlp_pallas.1} parent=1 // pred_check_branch
      %27 = sbr.rel (0) target = $region13
    $region12: #{mlp_pallas.1} parent=1 // pred_region
      _
    $region13: #{mlp_pallas.1} parent=1 // pred_fallthru
      _
    // Predicated region
    $region14: #{mlp_pallas.1} parent=1 // pred_check
      _
    $region15: #{mlp_pallas.1} parent=1 // pred_check_branch
      %29 = sbr.rel (0) target = $region17
    $region16: #{mlp_pallas.1} parent=1 // pred_region
      %s31 = ssub.s32 1024, 1024
      %32 = vsyncadd [#allocation5], %s31
      %s33 = sshll.u32 [#allocation4], 4
      %s34 = int_to_ptr.vmem [resolvable:$true] %s33
      %39 = dma.hbm_to_vmem [thread:$0]  %s3, 1024, %s34, [#allocation5], 64, 64, 4
    $region17: #{mlp_pallas.1} parent=1 // pred_fallthru
      _
    // Predicated region
    $region18: #{mlp_pallas.1} parent=1 // pred_check
      _
    $region19: #{mlp_pallas.1} parent=1 // pred_check_branch
      %41 = sbr.rel (0) target = $region21
    $region20: #{mlp_pallas.1} parent=1 // pred_region
      _
    $region21: #{mlp_pallas.1} parent=1 // pred_fallthru
      _
    // Predicated region
    $region22: #{mlp_pallas.1} parent=1 // pred_check
      _
    $region23: #{mlp_pallas.1} parent=1 // pred_check_branch
      %43 = sbr.rel (0) target = $region25
    $region24: #{mlp_pallas.1} parent=1 // pred_region
      %44 = dma.done [#allocation3], 1024
    $region25: #{mlp_pallas.1} parent=1 // pred_fallthru
      _
    // Predicated region
    $region26: #{mlp_pallas.1} parent=1 // pred_check
      _
    $region27: #{mlp_pallas.1} parent=1 // pred_check_branch
      %46 = sbr.rel (0) target = $region29
    $region28: #{mlp_pallas.1} parent=1 // pred_region
      %47 = dma.done [#allocation5], 1024
    $region29: #{mlp_pallas.1} parent=1 // pred_fallthru
      _
    %v49 = vld [vmem:[%s0] sm:$0xf]
    %v50 = vld [vmem:[%s0 + $0x4] sm:$0xf]
    %v51 = vld [vmem:[#allocation2] sm:$0xf]
    %v52 = vld [vmem:[#allocation2 + $0x4] sm:$0xf]
    %v53 = vld [vmem:[#allocation2 + $0x8] sm:$0xf]
    %v54 = vld [vmem:[#allocation2 + $0xc] sm:$0xf]
    %v55 = vld [vmem:[#allocation2 + $0x10] sm:$0xf]
    %v56 = vld [vmem:[#allocation2 + $0x14] sm:$0xf]
    %v57 = vld [vmem:[#allocation2 + $0x18] sm:$0xf]
    %v58 = vld [vmem:[#allocation2 + $0x1c] sm:$0xf]
    %v59 = vld [vmem:[#allocation2 + $0x20] sm:$0xf]
    %v60 = vld [vmem:[#allocation2 + $0x24] sm:$0xf]
    %v61 = vld [vmem:[#allocation2 + $0x28] sm:$0xf]
    %v62 = vld [vmem:[#allocation2 + $0x2c] sm:$0xf]
    %v63 = vld [vmem:[#allocation2 + $0x30] sm:$0xf]
    %v64 = vld [vmem:[#allocation2 + $0x34] sm:$0xf]
    %v65 = vld [vmem:[#allocation2 + $0x38] sm:$0xf]
    %v66 = vld [vmem:[#allocation2 + $0x3c] sm:$0xf]
    %v67 = vld [vmem:[%s2] sm:$0x1]
    %v69 = vlaneseq
    %v70 = vshrl.u32 %v69, 7
    %v71 = vsub.s32 0, %v70
    %v72 = vrot.slane %v67, %v71
    %v76 = vunpack.c.l.b16 %v49
    %v77 = vunpack.c.l.b16 %v50
    %v78 = vpack.c.b16 %v77, %v76
    %v96 = vunpack.c.l.b16 %v51
    %v97 = vunpack.c.l.b16 %v52
    %v98 = vunpack.c.l.b16 %v53
    %v99 = vunpack.c.l.b16 %v54
    %v100 = vunpack.c.l.b16 %v55
    %v101 = vunpack.c.l.b16 %v56
    %v102 = vunpack.c.l.b16 %v57
    %v103 = vunpack.c.l.b16 %v58
    %v104 = vunpack.c.l.b16 %v59
    %v105 = vunpack.c.l.b16 %v60
    %v106 = vunpack.c.l.b16 %v61
    %v107 = vunpack.c.l.b16 %v62
    %v108 = vunpack.c.l.b16 %v63
    %v109 = vunpack.c.l.b16 %v64
    %v110 = vunpack.c.l.b16 %v65
    %v111 = vunpack.c.l.b16 %v66
    %v112 = vpack.c.b16 %v97, %v96
    %v113 = vpack.c.b16 %v99, %v98
    %v114 = vpack.c.b16 %v101, %v100
    %v115 = vpack.c.b16 %v103, %v102
    %v116 = vpack.c.b16 %v105, %v104
    %v117 = vpack.c.b16 %v107, %v106
    %v118 = vpack.c.b16 %v109, %v108
    %v119 = vpack.c.b16 %v111, %v110
    %128 = vmatprep.subr.bf16.mxu0 0
    %129 = vmatpush1.bf16.msra.mxu0 %v112
    %130 = vmatprep.subr.bf16.mxu0 0
    %131 = vmatpush1.bf16.msra.mxu0 %v113
    %132 = vmatprep.subr.bf16.mxu0 0
    %133 = vmatpush1.bf16.msra.mxu0 %v114
    %134 = vmatprep.subr.bf16.mxu0 0
    %135 = vmatpush1.bf16.msra.mxu0 %v115
    %136 = vmatprep.subr.bf16.mxu0 0
    %137 = vmatpush1.bf16.msra.mxu0 %v116
    %138 = vmatprep.subr.bf16.mxu0 0
    %139 = vmatpush1.bf16.msra.mxu0 %v117
    %140 = vmatprep.subr.bf16.mxu0 0
    %141 = vmatpush1.bf16.msra.mxu0 %v118
    %142 = vmatprep.subr.bf16.mxu0 0
    %143 = vmatpush1.bf16.msra.mxu0 %v119
    %144 = vmatprep.subr.bf16.mxu0 0
    %145 = vmatpush1.bf16.msra.mxu0 0
    %146 = vmatprep.subr.bf16.mxu0 0
    %147 = vmatpush1.bf16.msra.mxu0 0
    %148 = vmatprep.subr.bf16.mxu0 0
    %149 = vmatpush1.bf16.msra.mxu0 0
    %150 = vmatprep.subr.bf16.mxu0 0
    %151 = vmatpush1.bf16.msra.mxu0 0
    %152 = vmatprep.subr.bf16.mxu0 0
    %153 = vmatpush1.bf16.msra.mxu0 0
    %154 = vmatprep.subr.bf16.mxu0 0
    %155 = vmatpush1.bf16.msra.mxu0 0
    %156 = vmatprep.subr.bf16.mxu0 0
    %157 = vmatpush1.bf16.msra.mxu0 0
    %158 = vmatprep.subr.bf16.mxu0 0
    %159 = vmatpush1.bf16.msra.mxu0 0
    %160 = vmatprep.mubr.bf16.mxu0 0
    %161 = vmatmul.mubr.bf16.gmra.mrb[0].mxu0 %v78
    %v162 = vpop.f32.mrb[0].mxu0
    %v163 = vadd.f32 %v72, %v162
    %v164 = vpop.f32.mrb[0].mxu0
    %v165 = vpop.f32.mrb[0].mxu0
    %v166 = vadd.f32 %v72, %v165
    %v167 = vpop.f32.mrb[0].mxu0
    %168 = vdwg.mxu0
    %v169 = vmul.f32 %v163, 0.5
    %v170 = vmul.f32 %v166, 0.5
    %v171 = vmul.f32 %v163, 0.70710677
    %v172 = vmul.f32 %v166, 0.70710677
    %v173 = verf.f32.pop %v171
    %v174 = verf.f32.pop %v172
    %v175 = vadd.f32 %v173, 1.0
    %v176 = vadd.f32 %v174, 1.0
    %v177 = vmul.f32 %v169, %v175
    %v178 = vmul.f32 %v170, %v176
    %v179 = vpack.c.bf16 %v178, %v177
    %v180 = vld [vmem:[#allocation4] sm:$0xf]
    %v181 = vld [vmem:[#allocation4 + $0x4] sm:$0xf]
    %v182 = vld [vmem:[#allocation4 + $0x8] sm:$0xf]
    %v183 = vld [vmem:[#allocation4 + $0xc] sm:$0xf]
    %v184 = vld [vmem:[#allocation4 + $0x10] sm:$0xf]
    %v185 = vld [vmem:[#allocation4 + $0x14] sm:$0xf]
    %v186 = vld [vmem:[#allocation4 + $0x18] sm:$0xf]
    %v187 = vld [vmem:[#allocation4 + $0x1c] sm:$0xf]
    %v188 = vld [vmem:[#allocation4 + $0x20] sm:$0xf]
    %v189 = vld [vmem:[#allocation4 + $0x24] sm:$0xf]
    %v190 = vld [vmem:[#allocation4 + $0x28] sm:$0xf]
    %v191 = vld [vmem:[#allocation4 + $0x2c] sm:$0xf]
    %v192 = vld [vmem:[#allocation4 + $0x30] sm:$0xf]
    %v193 = vld [vmem:[#allocation4 + $0x34] sm:$0xf]
    %v194 = vld [vmem:[#allocation4 + $0x38] sm:$0xf]
    %v195 = vld [vmem:[#allocation4 + $0x3c] sm:$0xf]
    %v196 = vld [vmem:[%s4] sm:$0x1]
    %v198 = vlaneseq
    %v199 = vshrl.u32 %v198, 7
    %v200 = vsub.s32 0, %v199
    %v201 = vrot.slane %v196, %v200
    %v219 = vunpack.c.l.b16 %v180
    %v220 = vunpack.c.l.b16 %v181
    %v221 = vunpack.c.l.b16 %v182
    %v222 = vunpack.c.l.b16 %v183
    %v223 = vunpack.c.l.b16 %v184
    %v224 = vunpack.c.l.b16 %v185
    %v225 = vunpack.c.l.b16 %v186
    %v226 = vunpack.c.l.b16 %v187
    %v227 = vunpack.c.l.b16 %v188
    %v228 = vunpack.c.l.b16 %v189
    %v229 = vunpack.c.l.b16 %v190
    %v230 = vunpack.c.l.b16 %v191
    %v231 = vunpack.c.l.b16 %v192
    %v232 = vunpack.c.l.b16 %v193
    %v233 = vunpack.c.l.b16 %v194
    %v234 = vunpack.c.l.b16 %v195
    %v235 = vpack.c.b16 %v220, %v219
    %v236 = vpack.c.b16 %v222, %v221
    %v237 = vpack.c.b16 %v224, %v223
    %v238 = vpack.c.b16 %v226, %v225
    %v239 = vpack.c.b16 %v228, %v227
    %v240 = vpack.c.b16 %v230, %v229
    %v241 = vpack.c.b16 %v232, %v231
    %v242 = vpack.c.b16 %v234, %v233
    %251 = vmatprep.subr.bf16.mxu0 0
    %252 = vmatpush1.bf16.msra.mxu0 %v235
    %253 = vmatprep.subr.bf16.mxu0 0
    %254 = vmatpush1.bf16.msra.mxu0 %v236
    %255 = vmatprep.subr.bf16.mxu0 0
    %256 = vmatpush1.bf16.msra.mxu0 %v237
    %257 = vmatprep.subr.bf16.mxu0 0
    %258 = vmatpush1.bf16.msra.mxu0 %v238
    %259 = vmatprep.subr.bf16.mxu0 0
    %260 = vmatpush1.bf16.msra.mxu0 %v239
    %261 = vmatprep.subr.bf16.mxu0 0
    %262 = vmatpush1.bf16.msra.mxu0 %v240
    %263 = vmatprep.subr.bf16.mxu0 0
    %264 = vmatpush1.bf16.msra.mxu0 %v241
    %265 = vmatprep.subr.bf16.mxu0 0
    %266 = vmatpush1.bf16.msra.mxu0 %v242
    %267 = vmatprep.subr.bf16.mxu0 0
    %268 = vmatpush1.bf16.msra.mxu0 0
    %269 = vmatprep.subr.bf16.mxu0 0
    %270 = vmatpush1.bf16.msra.mxu0 0
    %271 = vmatprep.subr.bf16.mxu0 0
    %272 = vmatpush1.bf16.msra.mxu0 0
    %273 = vmatprep.subr.bf16.mxu0 0
    %274 = vmatpush1.bf16.msra.mxu0 0
    %275 = vmatprep.subr.bf16.mxu0 0
    %276 = vmatpush1.bf16.msra.mxu0 0
    %277 = vmatprep.subr.bf16.mxu0 0
    %278 = vmatpush1.bf16.msra.mxu0 0
    %279 = vmatprep.subr.bf16.mxu0 0
    %280 = vmatpush1.bf16.msra.mxu0 0
    %281 = vmatprep.subr.bf16.mxu0 0
    %282 = vmatpush1.bf16.msra.mxu0 0
    %283 = vmatprep.mubr.bf16.mxu0 0
    %284 = vmatmul.mubr.bf16.gmra.mrb[0].mxu0 %v179
    %v285 = vpop.f32.mrb[0].mxu0
    %v286 = vadd.f32 %v201, %v285
    %v287 = vpop.f32.mrb[0].mxu0
    %v288 = vpop.f32.mrb[0].mxu0
    %v289 = vadd.f32 %v201, %v288
    %v290 = vpop.f32.mrb[0].mxu0
    %291 = vdwg.mxu0
    %292 = vst [vmem:[%s5] sm:$0xff] %v286
    %293 = vst [vmem:[%s5 + $0x8] sm:$0xff] %v289
    // Predicated region
    $region30: #{mlp_pallas.1} parent=1 // pred_check
      _
    $region31: #{mlp_pallas.1} parent=1 // pred_check_branch
      %295 = sbr.rel (0) target = $region33
    $region32: #{mlp_pallas.1} parent=1 // pred_region
      _
    $region33: #{mlp_pallas.1} parent=1 // pred_fallthru
      _
    // Predicated region
    $region34: #{mlp_pallas.1} parent=1 // pred_check
      _
    $region35: #{mlp_pallas.1} parent=1 // pred_check_branch
      %297 = sbr.rel (0) target = $region37
    $region36: #{mlp_pallas.1} parent=1 // pred_region
      _
    $region37: #{mlp_pallas.1} parent=1 // pred_fallthru
      _
    %298 = vsyncpa [#allocation3], 1
    %299 = vsyncpa [#allocation5], 1

</llo_original>
